<compile_context>
chip_gen: v6e
topology: v6e:2x2x1
jax: 0.10.0
libtpu: 0.0.40
codegen_flags: <defaults>
</compile_context>

<pallas_src>
from functools import partial
import math

import jax
import jax.numpy as jnp
from jax.experimental import pallas as pl
from jax.experimental.pallas import tpu as pltpu


def _round_up(x: int, m: int) -> int:
    return ((x + m - 1) // m) * m


def _cdiv(a: int, b: int) -> int:
    return (a + b - 1) // b


def _mlp_kernel(*refs, n_hidden):
    """Fused MLP on one batch tile.

    refs = (feat, w0, b0, [wh, bh,] wo, bo, out)
      feat : (TM, din)          concatenated z/y/x activations
      w0   : (din, H), b0 : (1, H)
      wh   : (n_hidden, H, H), bh : (n_hidden, 1, H)   (iff n_hidden > 0)
      wo   : (1, H), bo : (1, 1)
      out  : (1, 1, TM)         lane-dense sigmoid probabilities
    """
    feat_ref, w0_ref, b0_ref = refs[0], refs[1], refs[2]
    if n_hidden > 0:
        wh_ref, bh_ref = refs[3], refs[4]
        wo_ref, bo_ref, out_ref = refs[5], refs[6], refs[7]
    else:
        wh_ref, bh_ref = None, None
        wo_ref, bo_ref, out_ref = refs[3], refs[4], refs[5]

    # ---- layer 0: one aligned MXU pass over the full (din, H) weight ----
    h = jnp.dot(feat_ref[...], w0_ref[...], preferred_element_type=jnp.float32)
    h = jnp.maximum(h + b0_ref[...], 0.0)

    # ---- hidden stack (small, fixed -> static unroll) ----
    for l in range(n_hidden):
        h = jnp.dot(h, wh_ref[l], preferred_element_type=jnp.float32)
        h = jnp.maximum(h + bh_ref[l], 0.0)

    # ---- output layer: hidden -> 1 as VPU multiply + XLU reduce (skip the
    # N=1 MXU pass), then transpose (TM,1)->(1,TM) on the XLU so the store is
    # lane-dense (unmasked vst). ----
    logits = jnp.sum(h * wo_ref[...], axis=-1, keepdims=True) + bo_ref[...]   # (TM, 1)
    probs = jax.nn.sigmoid(logits)                                            # (TM, 1)
    out_ref[...] = probs.T.reshape(out_ref.shape).astype(out_ref.dtype)       # (1, 1, TM)


def init_discriminator_params(key, input_dim, hidden_dim, n_layers):
    """Deterministic init matching nn.Linear default U(-1/sqrt(fan_in), +)."""
    n_hidden = n_layers - 1
    keys = jax.random.split(key, 6)

    def lin(kw, kb, fan_in, fan_out, leading=()):
        bound = 1.0 / math.sqrt(fan_in)
        w = jax.random.uniform(kw, leading + (fan_in, fan_out),
                               jnp.float32, -bound, bound)
        b = jax.random.uniform(kb, leading + (1, fan_out),
                               jnp.float32, -bound, bound)
        return w, b

    w0, b0 = lin(keys[0], keys[1], input_dim, hidden_dim)
    wh, bh = lin(keys[2], keys[3], hidden_dim, hidden_dim, leading=(n_hidden,))
    # output layer stored as (1, hidden) / (1, 1) -> row layout for the in-kernel
    # multiply-reduce (equivalent to nn.Linear(hidden, 1)).
    bound_o = 1.0 / math.sqrt(hidden_dim)
    wo = jax.random.uniform(keys[4], (1, hidden_dim), jnp.float32, -bound_o, bound_o)
    bo = jax.random.uniform(keys[5], (1, 1), jnp.float32, -bound_o, bound_o)
    return dict(w0=w0, b0=b0, wh=wh, bh=bh, wo=wo, bo=bo)


def discriminator_forward(params, z, y=None, x=None, *, block_b=None,
                          max_block_b=4096):
    """Replicates Discriminator.forward; the whole MLP runs in one Pallas kernel.

    z/y/x are flattened and concatenated once in the wrapper (one cheap pass
    over a 19-wide tensor); the kernel then streams (block_b, din) tiles of the
    concatenated features against VMEM-resident weights and writes lane-dense
    (1, block_b) probability rows.
    """
    B = z.shape[0]
    parts = [z.reshape(B, -1).astype(jnp.float32)]
    if y is not None:
        parts.append(y.reshape(B, -1).astype(jnp.float32))
    if x is not None:
        parts.append(x.reshape(B, -1).astype(jnp.float32))
    feat = parts[0] if len(parts) == 1 else jnp.concatenate(parts, axis=-1)

    din, H = params["w0"].shape
    assert feat.shape[1] == din, "input parts do not match W0 fan-in"
    n_hidden = int(params["wh"].shape[0])

    # Batch tile selection:
    #   * cap at max_block_b (4096 keeps double-buffered activation tiles at
    #     ~4 MiB, well under v5e's 16 MiB default scoped VMEM),
    #   * force >= 2 tiles whenever B >= 16 so v7x megacore sharding engages,
    #   * size block_b ~= ceil(B / n_tiles) rounded to the 8-row sublane so the
    #     padded tail is bounded to < one tile.
    if block_b is None:
        n_tiles = max(_cdiv(B, max_block_b), 1)
        if B >= 16 and n_tiles < 2:
            n_tiles = 2
        block_b = _round_up(_cdiv(B, n_tiles), 8)
    else:
        block_b = _round_up(int(block_b), 8)
    n_tiles = _cdiv(B, block_b)
    padded_B = n_tiles * block_b
    if padded_B != B:
        feat = jnp.pad(feat, ((0, padded_B - B), (0, 0)))

    in_specs = [pl.BlockSpec((block_b, din), lambda i: (i, 0)),   # feat tile
                pl.BlockSpec((din, H), lambda i: (0, 0)),         # w0 (resident)
                pl.BlockSpec((1, H), lambda i: (0, 0))]           # b0 (resident)
    args = [feat, params["w0"], params["b0"]]
    if n_hidden > 0:
        in_specs += [pl.BlockSpec((n_hidden, H, H), lambda i: (0, 0, 0)),
                     pl.BlockSpec((n_hidden, 1, H), lambda i: (0, 0, 0))]
        args += [params["wh"], params["bh"]]
    in_specs += [pl.BlockSpec((1, H), lambda i: (0, 0)),
                 pl.BlockSpec((1, 1), lambda i: (0, 0))]
    args += [params["wo"], params["bo"]]

    out = pl.pallas_call(
        partial(_mlp_kernel, n_hidden=n_hidden),
        out_shape=jax.ShapeDtypeStruct((n_tiles, 1, block_b), jnp.float32),
        grid=(n_tiles,),
        in_specs=in_specs,
        # Lane-dense output block: full rows of 128-lane-aligned probabilities.
        out_specs=pl.BlockSpec((1, 1, block_b), lambda i: (i, 0, 0)),
        compiler_params=pltpu.CompilerParams(
            dimension_semantics=("parallel",)),
    )(*args)

    # (n_tiles, 1, block_b) -> (B, 1); padded tail rows are discarded.
    return out.reshape(-1)[:B].reshape(B, 1)


def discriminator_reference(params, z, y=None, x=None):
    """Pure-JAX reference for correctness checking."""
    B = z.shape[0]
    feat = z.reshape(B, -1)
    if y is not None:
        feat = jnp.concatenate([feat, y], axis=-1)
    if x is not None:
        feat = jnp.concatenate([feat, x.reshape(B, -1)], axis=-1)
    h = jnp.maximum(feat @ params["w0"] + params["b0"], 0.0)
    for l in range(params["wh"].shape[0]):
        h = jnp.maximum(h @ params["wh"][l] + params["bh"][l], 0.0)
    return jax.nn.sigmoid(h @ params["wo"].T + params["bo"])


if __name__ == "__main__":
    # Module hyperparameters (small, consistent with the __init__ signature).
    latent_dim, n_comps, hidden_dim, n_layers = 4, 2, 32, 3
    x_input_dim, y_dim = 4, 3
    use_original_x, use_invariant_y = True, True

    total_input_dim = latent_dim * n_comps            # 8
    if use_original_x:
        total_input_dim += x_input_dim * n_comps      # +8
    if use_invariant_y:
        total_input_dim += y_dim                      # +3 -> 19

    key = jax.random.PRNGKey(0)
    kp, kz, ky, kx = jax.random.split(key, 4)

    params = init_discriminator_params(kp, total_input_dim, hidden_dim, n_layers)

    # --- case 1: small batch, single tile (grid = 1) ---
    B = 8
    z = jax.random.normal(kz, (B, n_comps, latent_dim), jnp.float32)
    y = jax.random.normal(ky, (B, y_dim), jnp.float32)
    x = jax.random.normal(kx, (B, n_comps, x_input_dim), jnp.float32)

    out = jax.block_until_ready(discriminator_forward(params, z, y=y, x=x))
    ref = discriminator_reference(params, z, y=y, x=x)
    assert out.shape == (B, 1)
    assert jnp.allclose(out, ref, atol=1e-5, rtol=1e-5), "mismatch vs reference (B=8)"

    # --- case 2: non-divisible batch with explicit small tile (7-step grid) ---
    B2 = 50
    kz2, ky2, kx2 = jax.random.split(jax.random.PRNGKey(1), 3)
    z2 = jax.random.normal(kz2, (B2, n_comps, latent_dim), jnp.float32)
    y2 = jax.random.normal(ky2, (B2, y_dim), jnp.float32)
    x2 = jax.random.normal(kx2, (B2, n_comps, x_input_dim), jnp.float32)

    out2 = jax.block_until_ready(
        discriminator_forward(params, z2, y=y2, x=x2, block_b=8))
    ref2 = discriminator_reference(params, z2, y=y2, x=x2)
    assert out2.shape == (B2, 1)
    assert jnp.allclose(out2, ref2, atol=1e-5, rtol=1e-5), "mismatch vs reference (B=50, block_b=8)"

    # --- case 3: default tile selection (forces >= 2 tiles, bounded padding) ---
    out3 = jax.block_until_ready(discriminator_forward(params, z2, y=y2, x=x2))
    assert out3.shape == (B2, 1)
    assert jnp.allclose(out3, ref2, atol=1e-5, rtol=1e-5), "mismatch vs reference (B=50, auto tile)"

    print("KERNEL_OK")
</pallas_src>

<mosaic_0001>
module attributes {stable_mosaic.version = 11 : i64} {
  func.func @_mlp_kernel(%arg0: i32, %arg1: memref<8x19xf32, #tpu.memory_space<vmem>>, %arg2: memref<19x32xf32, #tpu.memory_space<vmem>>, %arg3: memref<1x32xf32, #tpu.memory_space<vmem>>, %arg4: memref<2x32x32xf32, #tpu.memory_space<vmem>>, %arg5: memref<2x1x32xf32, #tpu.memory_space<vmem>>, %arg6: memref<1x32xf32, #tpu.memory_space<vmem>>, %arg7: memref<1x1xf32, #tpu.memory_space<vmem>>, %arg8: memref<1x1x8xf32, #tpu.memory_space<vmem>>) attributes {dimension_semantics = [#tpu.dimension_semantics<parallel>], iteration_bounds = array<i64: 1>, scalar_prefetch = 0 : i64, scratch_operands = 0 : i64, tpu.core_type = #tpu.core_type<tc>, window_params = [{transform_indices = @transform_0, window_bounds = array<i64: 8, 19>}, {pipeline_mode = #tpu.pipeline_mode<synchronous>, transform_indices = @transform_1, window_bounds = array<i64: 19, 32>}, {pipeline_mode = #tpu.pipeline_mode<synchronous>, transform_indices = @transform_2, window_bounds = array<i64: 1, 32>}, {pipeline_mode = #tpu.pipeline_mode<synchronous>, transform_indices = @transform_3, window_bounds = array<i64: 2, 32, 32>}, {pipeline_mode = #tpu.pipeline_mode<synchronous>, transform_indices = @transform_4, window_bounds = array<i64: 2, 1, 32>}, {pipeline_mode = #tpu.pipeline_mode<synchronous>, transform_indices = @transform_5, window_bounds = array<i64: 1, 32>}, {pipeline_mode = #tpu.pipeline_mode<synchronous>, transform_indices = @transform_6, window_bounds = array<i64: 1, 1>}, {transform_indices = @transform_7, window_bounds = array<i64: 1, 1, 8>}]} {
    %c0 = arith.constant 0 : index
    %c0_0 = arith.constant 0 : index
    %0 = vector.load %arg1[%c0, %c0_0] : memref<8x19xf32, #tpu.memory_space<vmem>>, vector<8x19xf32>
    %c0_1 = arith.constant 0 : index
    %c0_2 = arith.constant 0 : index
    %1 = vector.load %arg2[%c0_1, %c0_2] : memref<19x32xf32, #tpu.memory_space<vmem>>, vector<19x32xf32>
    %cst = arith.constant dense<0.000000e+00> : vector<8x32xf32>
    %2 = tpu.matmul %0, %1, %cst {dimension_numbers = #tpu.dot_dimension_numbers<[1], [0], [0], [1], [0, 0, 1, 1], [], []>} : vector<8x19xf32>, vector<19x32xf32>, vector<8x32xf32> -> vector<8x32xf32>
    %c0_3 = arith.constant 0 : index
    %c0_4 = arith.constant 0 : index
    %3 = vector.load %arg3[%c0_3, %c0_4] : memref<1x32xf32, #tpu.memory_space<vmem>>, vector<1x32xf32>
    %4 = vector.broadcast %3 : vector<1x32xf32> to vector<8x32xf32>
    %5 = arith.addf %2, %4 : vector<8x32xf32>
    %cst_5 = arith.constant 0.000000e+00 : f32
    %6 = vector.broadcast %cst_5 : f32 to vector<8x32xf32>
    %7 = arith.maximumf %5, %6 : vector<8x32xf32>
    %c0_6 = arith.constant 0 : index
    %c0_7 = arith.constant 0 : index
    %c0_8 = arith.constant 0 : index
    %8 = vector.load %arg4[%c0_6, %c0_7, %c0_8] : memref<2x32x32xf32, #tpu.memory_space<vmem>>, vector<1x32x32xf32>
    %9 = vector.shape_cast %8 : vector<1x32x32xf32> to vector<32x32xf32>
    %cst_9 = arith.constant dense<0.000000e+00> : vector<8x32xf32>
    %10 = tpu.matmul %7, %9, %cst_9 {dimension_numbers = #tpu.dot_dimension_numbers<[1], [0], [0], [1], [0, 0, 1, 1], [], []>} : vector<8x32xf32>, vector<32x32xf32>, vector<8x32xf32> -> vector<8x32xf32>
    %c0_10 = arith.constant 0 : index
    %c0_11 = arith.constant 0 : index
    %c0_12 = arith.constant 0 : index
    %11 = vector.load %arg5[%c0_10, %c0_11, %c0_12] : memref<2x1x32xf32, #tpu.memory_space<vmem>>, vector<1x1x32xf32>
    %12 = vector.shape_cast %11 : vector<1x1x32xf32> to vector<1x32xf32>
    %13 = vector.broadcast %12 : vector<1x32xf32> to vector<8x32xf32>
    %14 = arith.addf %10, %13 : vector<8x32xf32>
    %cst_13 = arith.constant 0.000000e+00 : f32
    %15 = vector.broadcast %cst_13 : f32 to vector<8x32xf32>
    %16 = arith.maximumf %14, %15 : vector<8x32xf32>
    %c1 = arith.constant 1 : index
    %c0_14 = arith.constant 0 : index
    %c0_15 = arith.constant 0 : index
    %17 = vector.load %arg4[%c1, %c0_14, %c0_15] : memref<2x32x32xf32, #tpu.memory_space<vmem>>, vector<1x32x32xf32>
    %18 = vector.shape_cast %17 : vector<1x32x32xf32> to vector<32x32xf32>
    %cst_16 = arith.constant dense<0.000000e+00> : vector<8x32xf32>
    %19 = tpu.matmul %16, %18, %cst_16 {dimension_numbers = #tpu.dot_dimension_numbers<[1], [0], [0], [1], [0, 0, 1, 1], [], []>} : vector<8x32xf32>, vector<32x32xf32>, vector<8x32xf32> -> vector<8x32xf32>
    %c1_17 = arith.constant 1 : index
    %c0_18 = arith.constant 0 : index
    %c0_19 = arith.constant 0 : index
    %20 = vector.load %arg5[%c1_17, %c0_18, %c0_19] : memref<2x1x32xf32, #tpu.memory_space<vmem>>, vector<1x1x32xf32>
    %21 = vector.shape_cast %20 : vector<1x1x32xf32> to vector<1x32xf32>
    %22 = vector.broadcast %21 : vector<1x32xf32> to vector<8x32xf32>
    %23 = arith.addf %19, %22 : vector<8x32xf32>
    %cst_20 = arith.constant 0.000000e+00 : f32
    %24 = vector.broadcast %cst_20 : f32 to vector<8x32xf32>
    %25 = arith.maximumf %23, %24 : vector<8x32xf32>
    %c0_21 = arith.constant 0 : index
    %c0_22 = arith.constant 0 : index
    %26 = vector.load %arg6[%c0_21, %c0_22] : memref<1x32xf32, #tpu.memory_space<vmem>>, vector<1x32xf32>
    %27 = vector.broadcast %26 : vector<1x32xf32> to vector<8x32xf32>
    %28 = arith.mulf %25, %27 : vector<8x32xf32>
    %cst_23 = arith.constant dense<0.000000e+00> : vector<8xf32>
    %29 = vector.multi_reduction <add>, %28, %cst_23 [1] : vector<8x32xf32> to vector<8xf32>
    %30 = vector.shape_cast %29 : vector<8xf32> to vector<8x1xf32>
    %c0_24 = arith.constant 0 : index
    %c0_25 = arith.constant 0 : index
    %31 = vector.load %arg7[%c0_24, %c0_25] : memref<1x1xf32, #tpu.memory_space<vmem>>, vector<1x1xf32>
    %32 = vector.broadcast %31 : vector<1x1xf32> to vector<8x1xf32>
    %33 = arith.addf %30, %32 : vector<8x1xf32>
    %34 = arith.negf %33 : vector<8x1xf32>
    %35 = math.exp %34 : vector<8x1xf32>
    %cst_26 = arith.constant 1.000000e+00 : f32
    %36 = vector.broadcast %cst_26 : f32 to vector<8x1xf32>
    %37 = arith.addf %36, %35 : vector<8x1xf32>
    %38 = arith.divf %36, %37 : vector<8x1xf32>
    %39 = tpu.transpose %38, [1, 0] : vector<8x1xf32> -> vector<1x8xf32>
    %40 = vector.shape_cast %39 : vector<1x8xf32> to vector<1x1x8xf32>
    %c0_27 = arith.constant 0 : index
    %c0_28 = arith.constant 0 : index
    %c0_29 = arith.constant 0 : index
    %41 = vector.load %arg8[%c0_27, %c0_28, %c0_29] : memref<1x1x8xf32, #tpu.memory_space<vmem>>, vector<1x1x8xf32>
    tpu.vector_store %arg8[%c0_27, %c0_28, %c0_29], %40 {strides = array<i32>} : memref<1x1x8xf32, #tpu.memory_space<vmem>>, vector<1x1x8xf32>,
    return
  }
  func.func @transform_0(%arg0: i32) -> (i32, i32) {
    %c0_i32 = arith.constant 0 : i32
    %c0_i32_0 = arith.constant 0 : i32
    return %arg0, %c0_i32 : i32, i32
  }
  func.func @transform_1(%arg0: i32) -> (i32, i32) {
    %c0_i32 = arith.constant 0 : i32
    %c0_i32_0 = arith.constant 0 : i32
    %c0_i32_1 = arith.constant 0 : i32
    return %c0_i32, %c0_i32_0 : i32, i32
  }
  func.func @transform_2(%arg0: i32) -> (i32, i32) {
    %c0_i32 = arith.constant 0 : i32
    %c0_i32_0 = arith.constant 0 : i32
    %c0_i32_1 = arith.constant 0 : i32
    return %c0_i32, %c0_i32_0 : i32, i32
  }
  func.func @transform_3(%arg0: i32) -> (i32, i32, i32) {
    %c0_i32 = arith.constant 0 : i32
    %c0_i32_0 = arith.constant 0 : i32
    %c0_i32_1 = arith.constant 0 : i32
    %c0_i32_2 = arith.constant 0 : i32
    return %c0_i32, %c0_i32_0, %c0_i32_1 : i32, i32, i32
  }
  func.func @transform_4(%arg0: i32) -> (i32, i32, i32) {
    %c0_i32 = arith.constant 0 : i32
    %c0_i32_0 = arith.constant 0 : i32
    %c0_i32_1 = arith.constant 0 : i32
    %c0_i32_2 = arith.constant 0 : i32
    return %c0_i32, %c0_i32_0, %c0_i32_1 : i32, i32, i32
  }
  func.func @transform_5(%arg0: i32) -> (i32, i32) {
    %c0_i32 = arith.constant 0 : i32
    %c0_i32_0 = arith.constant 0 : i32
    %c0_i32_1 = arith.constant 0 : i32
    return %c0_i32, %c0_i32_0 : i32, i32
  }
  func.func @transform_6(%arg0: i32) -> (i32, i32) {
    %c0_i32 = arith.constant 0 : i32
    %c0_i32_0 = arith.constant 0 : i32
    %c0_i32_1 = arith.constant 0 : i32
    return %c0_i32, %c0_i32_0 : i32, i32
  }
  func.func @transform_7(%arg0: i32) -> (i32, i32, i32) {
    %c0_i32 = arith.constant 0 : i32
    %c0_i32_0 = arith.constant 0 : i32
    %c0_i32_1 = arith.constant 0 : i32
    return %arg0, %c0_i32, %c0_i32_0 : i32, i32, i32
  }
}

</mosaic_0001>

<llo_original>
// kernel: tpu_custom_call.1
$region0: #{tpu_custom_call.1}
  #allocation0 [shape = 'u32[]', space=smem, size = 0x4, offset = 0x4, fixed_abs, tag = 'smem constant byte address 0x4 - core index']
  #allocation1 [shape = 'u32[144,128]{1,0:T(1,128)}', space=vmem, size = 0x12000, scoped, tag = 'internal scratch']
  #allocation2 [shape = 'f32[1,1]{1,0:T(1,128)S(1)}', space=vmem, size = 0x200, scoped, tag = 'scoped memory for tpu_custom_call.1']
  %s0 = inlined_call_operand.hbm [shape: f32[8,19], index: 0, kind: input, shape index: {}]
  %s1 = inlined_call_operand.hbm [shape: f32[19,32], index: 1, kind: input, shape index: {}]
  %s2 = inlined_call_operand.vmem [shape: f32[1,32], index: 2, kind: input, shape index: {}]
  %s3 = inlined_call_operand.hbm [shape: f32[2,32,32], index: 3, kind: input, shape index: {}]
  %s4 = inlined_call_operand.vmem [shape: f32[2,1,32], index: 4, kind: input, shape index: {}]
  %s5 = inlined_call_operand.vmem [shape: f32[1,32], index: 5, kind: input, shape index: {}]
  %s6 = inlined_call_operand.<no memory space> [shape: f32[1,1], index: 6, kind: input, shape index: {}]
  %s7 = inlined_call_operand.hbm [shape: f32[1,1,8], index: 7, kind: output, shape index: {}]
  %s8 = sld [smem:[#allocation0]]
  $region50: #{tpu_custom_call.1} parent=0
    _
  %s10 = ssub.s32 1, %s8
  %s11 = scalar_select 0, %s10, %s8
  %v12 = vstv %s6
  %13 = vst [vmem:[#allocation2] sm:$0x1] %v12
  $region1: #{tpu_custom_call.1} parent=0
    #allocation3 [shape = 'u8[4096]{0}', space=vmem, size = 0x1000, scoped, tag = 'input window, operand 0, single buffered']
    #allocation4 [shape = 's32[1]{0}', space=sflag, size = 0x4, scoped, tag = 'scoped memory for tpu_custom_call.1']
    #allocation5 [shape = 's32[1]{0}', space=sflag, size = 0x4, scoped, tag = 'scoped memory for tpu_custom_call.1']
    #allocation6 [shape = 'u8[12288]{0}', space=vmem, size = 0x3000, scoped, tag = 'input window, operand 1, single buffered']
    #allocation7 [shape = 's32[1]{0}', space=sflag, size = 0x4, scoped, tag = 'scoped memory for tpu_custom_call.1']
    #allocation8 [shape = 'u8[32768]{0}', space=vmem, size = 0x8000, scoped, tag = 'input window, operand 3, single buffered']
    #allocation9 [shape = 'u8[512]{0}', space=vmem, size = 0x400, scoped, tag = 'output window, operand 0, single buffered']
    %14 = vsyncpa [#allocation4], 0
    %15 = vsyncpa [#allocation7], 0
    %16 = vsyncpa [#allocation5], 0
    // Predicated region
    $region2: #{tpu_custom_call.1} parent=1 // pred_check
      _
    $region3: #{tpu_custom_call.1} parent=1 // pred_check_branch
      %18 = sbr.rel (0) target = $region5
    $region4: #{tpu_custom_call.1} parent=1 // pred_region
      %s20 = ssub.s32 128, 128
      %21 = vsyncadd [#allocation4], %s20
      %s23 = sshll.u32 [#allocation3], 4
      %s24 = int_to_ptr.vmem [resolvable:$true] %s23
      %26 = dma.hbm_to_vmem [thread:$0]  %s0, 128, %s24, [#allocation4]
    $region5: #{tpu_custom_call.1} parent=1 // pred_fallthru
      _
    // Predicated region
    $region6: #{tpu_custom_call.1} parent=1 // pred_check
      _
    $region7: #{tpu_custom_call.1} parent=1 // pred_check_branch
      %28 = sbr.rel (0) target = $region9
    $region8: #{tpu_custom_call.1} parent=1 // pred_region
      %s30 = ssub.s32 384, 384
      %31 = vsyncadd [#allocation7], %s30
      %s32 = sshll.u32 [#allocation6], 4
      %s33 = int_to_ptr.vmem [resolvable:$true] %s32
      %38 = dma.hbm_to_vmem [thread:$0]  %s1, 384, %s33, [#allocation7], 128, 128, 8
    $region9: #{tpu_custom_call.1} parent=1 // pred_fallthru
      _
    // Predicated region
    $region10: #{tpu_custom_call.1} parent=1 // pred_check
      _
    $region11: #{tpu_custom_call.1} parent=1 // pred_check_branch
      %40 = sbr.rel (0) target = $region13
    $region12: #{tpu_custom_call.1} parent=1 // pred_region
      _
    $region13: #{tpu_custom_call.1} parent=1 // pred_fallthru
      _
    // Predicated region
    $region14: #{tpu_custom_call.1} parent=1 // pred_check
      _
    $region15: #{tpu_custom_call.1} parent=1 // pred_check_branch
      %42 = sbr.rel (0) target = $region17
    $region16: #{tpu_custom_call.1} parent=1 // pred_region
      %s44 = ssub.s32 1024, 1024
      %45 = vsyncadd [#allocation7], %s44
      %s46 = sshll.u32 [#allocation8], 4
      %s47 = int_to_ptr.vmem [resolvable:$true] %s46
      %52 = dma.hbm_to_vmem [thread:$0]  %s3, 1024, %s47, [#allocation7], 128, 128, 8
    $region17: #{tpu_custom_call.1} parent=1 // pred_fallthru
      _
    // Predicated region
    $region18: #{tpu_custom_call.1} parent=1 // pred_check
      _
    $region19: #{tpu_custom_call.1} parent=1 // pred_check_branch
      %54 = sbr.rel (0) target = $region21
    $region20: #{tpu_custom_call.1} parent=1 // pred_region
      _
    $region21: #{tpu_custom_call.1} parent=1 // pred_fallthru
      _
    // Predicated region
    $region22: #{tpu_custom_call.1} parent=1 // pred_check
      _
    $region23: #{tpu_custom_call.1} parent=1 // pred_check_branch
      %56 = sbr.rel (0) target = $region25
    $region24: #{tpu_custom_call.1} parent=1 // pred_region
      _
    $region25: #{tpu_custom_call.1} parent=1 // pred_fallthru
      _
    // Predicated region
    $region26: #{tpu_custom_call.1} parent=1 // pred_check
      _
    $region27: #{tpu_custom_call.1} parent=1 // pred_check_branch
      %58 = sbr.rel (0) target = $region29
    $region28: #{tpu_custom_call.1} parent=1 // pred_region
      _
    $region29: #{tpu_custom_call.1} parent=1 // pred_fallthru
      _
    // Predicated region
    $region30: #{tpu_custom_call.1} parent=1 // pred_check
      _
    $region31: #{tpu_custom_call.1} parent=1 // pred_check_branch
      %60 = sbr.rel (0) target = $region33
    $region32: #{tpu_custom_call.1} parent=1 // pred_region
      %61 = dma.done [#allocation4], 128
    $region33: #{tpu_custom_call.1} parent=1 // pred_fallthru
      _
    // Predicated region
    $region34: #{tpu_custom_call.1} parent=1 // pred_check
      _
    $region35: #{tpu_custom_call.1} parent=1 // pred_check_branch
      %63 = sbr.rel (0) target = $region37
    $region36: #{tpu_custom_call.1} parent=1 // pred_region
      %64 = dma.done [#allocation7], 384
    $region37: #{tpu_custom_call.1} parent=1 // pred_fallthru
      _
    // Predicated region
    $region38: #{tpu_custom_call.1} parent=1 // pred_check
      _
    $region39: #{tpu_custom_call.1} parent=1 // pred_check_branch
      %66 = sbr.rel (0) target = $region41
    $region40: #{tpu_custom_call.1} parent=1 // pred_region
      %67 = dma.done [#allocation7], 1024
    $region41: #{tpu_custom_call.1} parent=1 // pred_fallthru
      _
    %v68 = vld [vmem:[#allocation3] sm:$0xff]
    %v69 = vld [vmem:[#allocation6] sm:$0xff]
    %v70 = vld [vmem:[#allocation6 + $0x8] sm:$0xff]
    %v71 = vld [vmem:[#allocation6 + $0x10] sm:$0x7]
    %v72 = vld [vmem:[%s2] sm:$0x1]
    %v74 = vlaneseq
    %v75 = vshrl.u32 %v74, 7
    %v76 = vsub.s32 0, %v75
    %v77 = vrot.slane %v72, %v76
    %vm79 = vcmask 154624
    %v81 = vsel %vm79, %v68, 0
    %vm83 = vcmask 1042432
    %v85 = vsel %vm83, %v71, 0
    %87 = vmatprep.subr.mxu0 0.0
    %88 = vmatpush1.msra.mxu0 0.0
    %89 = vmatprep.subr.mxu0 0.0
    %90 = vmatpush1.msra.mxu0 0.0
    %91 = vmatprep.subr.mxu0 0.0
    %92 = vmatpush1.msra.mxu0 0.0
    %93 = vmatprep.subr.mxu0 0.0
    %94 = vmatpush1.msra.mxu0 0.0
    %95 = vmatprep.subr.mxu0 0.0
    %96 = vmatpush1.msra.mxu0 0.0
    %97 = vmatprep.subr.mxu0 0.0
    %98 = vmatpush1.msra.mxu0 0.0
    %99 = vmatprep.subr.mxu0 0.0
    %100 = vmatpush1.msra.mxu0 0.0
    %101 = vmatprep.subr.mxu0 0.0
    %102 = vmatpush1.msra.mxu0 0.0
    %103 = vmatprep.subr.mxu0 0.0
    %104 = vmatpush1.msra.mxu0 0.0
    %105 = vmatprep.subr.mxu0 0.0
    %106 = vmatpush1.msra.mxu0 0.0
    %107 = vmatprep.subr.mxu0 0.0
    %108 = vmatpush1.msra.mxu0 0.0
    %109 = vmatprep.subr.mxu0 0.0
    %110 = vmatpush1.msra.mxu0 0.0
    %111 = vmatprep.subr.mxu0 0.0
    %112 = vmatpush1.msra.mxu0 0.0
    %113 = vmatprep.subr.mxu0 0.0
    %114 = vmatpush1.msra.mxu0 %v85
    %115 = vmatprep.subr.mxu0 0.0
    %116 = vmatpush1.msra.mxu0 %v70
    %117 = vmatprep.subr.mxu0 0.0
    %118 = vmatpush1.msra.mxu0 %v69
    %119 = vmatprep.subr.mxu0 0.0
    %120 = vmatpush2.msra.mxu0 0.0
    %121 = vmatprep.subr.mxu0 0.0
    %122 = vmatpush2.msra.mxu0 0.0
    %123 = vmatprep.subr.mxu0 0.0
    %124 = vmatpush2.msra.mxu0 0.0
    %125 = vmatprep.subr.mxu0 0.0
    %126 = vmatpush2.msra.mxu0 0.0
    %127 = vmatprep.subr.mxu0 0.0
    %128 = vmatpush2.msra.mxu0 0.0
    %129 = vmatprep.subr.mxu0 0.0
    %130 = vmatpush2.msra.mxu0 0.0
    %131 = vmatprep.subr.mxu0 0.0
    %132 = vmatpush2.msra.mxu0 0.0
    %133 = vmatprep.subr.mxu0 0.0
    %134 = vmatpush2.msra.mxu0 0.0
    %135 = vmatprep.subr.mxu0 0.0
    %136 = vmatpush2.msra.mxu0 0.0
    %137 = vmatprep.subr.mxu0 0.0
    %138 = vmatpush2.msra.mxu0 0.0
    %139 = vmatprep.subr.mxu0 0.0
    %140 = vmatpush2.msra.mxu0 0.0
    %141 = vmatprep.subr.mxu0 0.0
    %142 = vmatpush2.msra.mxu0 0.0
    %143 = vmatprep.subr.mxu0 0.0
    %144 = vmatpush2.msra.mxu0 0.0
    %145 = vmatprep.subr.mxu0 0.0
    %146 = vmatpush2.msra.mxu0 0.0
    %147 = vmatprep.subr.mxu0 0.0
    %148 = vmatpush2.msra.mxu0 0.0
    %149 = vmatprep.subr.mxu0 0.0
    %150 = vmatpush2.msra.mxu0 0.0
    %151 = vmatprep.mubr.f32.mxu0 0.0
    %152 = vmatmul.mubr.f32.gmra.mxu0 %v81
    %v153 = vpop.f32.mrf.mxu0
    %v154 = vadd.f32 %v77, %v153
    %v155 = vpop.f32.mrf.mxu0
    %156 = vdwg.mxu0
    %v157 = vmax.f32 %v154, 0.0
    %v158 = vld [vmem:[#allocation8] sm:$0xff]
    %v159 = vld [vmem:[#allocation8 + $0x8] sm:$0xff]
    %v160 = vld [vmem:[#allocation8 + $0x10] sm:$0xff]
    %v161 = vld [vmem:[#allocation8 + $0x18] sm:$0xff]
    %v162 = vld [vmem:[%s4] sm:$0x1]
    %v164 = vlaneseq
    %v165 = vshrl.u32 %v164, 7
    %v166 = vsub.s32 0, %v165
    %v167 = vrot.slane %v162, %v166
    %vm169 = vcmask 261120
    %v171 = vsel %vm169, %v157, 0
    %173 = vmatprep.subr.mxu0 0.0
    %174 = vmatpush1.msra.mxu0 0.0
    %175 = vmatprep.subr.mxu0 0.0
    %176 = vmatpush1.msra.mxu0 0.0
    %177 = vmatprep.subr.mxu0 0.0
    %178 = vmatpush1.msra.mxu0 0.0
    %179 = vmatprep.subr.mxu0 0.0
    %180 = vmatpush1.msra.mxu0 0.0
    %181 = vmatprep.subr.mxu0 0.0
    %182 = vmatpush1.msra.mxu0 0.0
    %183 = vmatprep.subr.mxu0 0.0
    %184 = vmatpush1.msra.mxu0 0.0
    %185 = vmatprep.subr.mxu0 0.0
    %186 = vmatpush1.msra.mxu0 0.0
    %187 = vmatprep.subr.mxu0 0.0
    %188 = vmatpush1.msra.mxu0 0.0
    %189 = vmatprep.subr.mxu0 0.0
    %190 = vmatpush1.msra.mxu0 0.0
    %191 = vmatprep.subr.mxu0 0.0
    %192 = vmatpush1.msra.mxu0 0.0
    %193 = vmatprep.subr.mxu0 0.0
    %194 = vmatpush1.msra.mxu0 0.0
    %195 = vmatprep.subr.mxu0 0.0
    %196 = vmatpush1.msra.mxu0 0.0
    %197 = vmatprep.subr.mxu0 0.0
    %198 = vmatpush1.msra.mxu0 %v161
    %199 = vmatprep.subr.mxu0 0.0
    %200 = vmatpush1.msra.mxu0 %v160
    %201 = vmatprep.subr.mxu0 0.0
    %202 = vmatpush1.msra.mxu0 %v159
    %203 = vmatprep.subr.mxu0 0.0
    %204 = vmatpush1.msra.mxu0 %v158
    %205 = vmatprep.subr.mxu0 0.0
    %206 = vmatpush2.msra.mxu0 0.0
    %207 = vmatprep.subr.mxu0 0.0
    %208 = vmatpush2.msra.mxu0 0.0
    %209 = vmatprep.subr.mxu0 0.0
    %210 = vmatpush2.msra.mxu0 0.0
    %211 = vmatprep.subr.mxu0 0.0
    %212 = vmatpush2.msra.mxu0 0.0
    %213 = vmatprep.subr.mxu0 0.0
    %214 = vmatpush2.msra.mxu0 0.0
    %215 = vmatprep.subr.mxu0 0.0
    %216 = vmatpush2.msra.mxu0 0.0
    %217 = vmatprep.subr.mxu0 0.0
    %218 = vmatpush2.msra.mxu0 0.0
    %219 = vmatprep.subr.mxu0 0.0
    %220 = vmatpush2.msra.mxu0 0.0
    %221 = vmatprep.subr.mxu0 0.0
    %222 = vmatpush2.msra.mxu0 0.0
    %223 = vmatprep.subr.mxu0 0.0
    %224 = vmatpush2.msra.mxu0 0.0
    %225 = vmatprep.subr.mxu0 0.0
    %226 = vmatpush2.msra.mxu0 0.0
    %227 = vmatprep.subr.mxu0 0.0
    %228 = vmatpush2.msra.mxu0 0.0
    %229 = vmatprep.subr.mxu0 0.0
    %230 = vmatpush2.msra.mxu0 0.0
    %231 = vmatprep.subr.mxu0 0.0
    %232 = vmatpush2.msra.mxu0 0.0
    %233 = vmatprep.subr.mxu0 0.0
    %234 = vmatpush2.msra.mxu0 0.0
    %235 = vmatprep.subr.mxu0 0.0
    %236 = vmatpush2.msra.mxu0 0.0
    %237 = vmatprep.mubr.f32.mxu0 0.0
    %238 = vmatmul.mubr.f32.gmra.mxu0 %v171
    %v239 = vpop.f32.mrf.mxu0
    %v240 = vadd.f32 %v167, %v239
    %v241 = vpop.f32.mrf.mxu0
    %242 = vdwg.mxu0
    %v243 = vmax.f32 %v240, 0.0
    %s244 = scalar_lea.vmem [#allocation8], 32
    %v245 = vld [vmem:[%s244] sm:$0xff]
    %v246 = vld [vmem:[%s244 + $0x8] sm:$0xff]
    %v247 = vld [vmem:[%s244 + $0x10] sm:$0xff]
    %v248 = vld [vmem:[%s244 + $0x18] sm:$0xff]
    %s249 = scalar_lea.vmem %s4, 1
    %v250 = vld [vmem:[%s249] sm:$0x1]
    %v252 = vlaneseq
    %v253 = vshrl.u32 %v252, 7
    %v254 = vsub.s32 0, %v253
    %v255 = vrot.slane %v250, %v254
    %v258 = vsel %vm169, %v243, 0
    %260 = vmatprep.subr.mxu0 0.0
    %261 = vmatpush1.msra.mxu0 0.0
    %262 = vmatprep.subr.mxu0 0.0
    %263 = vmatpush1.msra.mxu0 0.0
    %264 = vmatprep.subr.mxu0 0.0
    %265 = vmatpush1.msra.mxu0 0.0
    %266 = vmatprep.subr.mxu0 0.0
    %267 = vmatpush1.msra.mxu0 0.0
    %268 = vmatprep.subr.mxu0 0.0
    %269 = vmatpush1.msra.mxu0 0.0
    %270 = vmatprep.subr.mxu0 0.0
    %271 = vmatpush1.msra.mxu0 0.0
    %272 = vmatprep.subr.mxu0 0.0
    %273 = vmatpush1.msra.mxu0 0.0
    %274 = vmatprep.subr.mxu0 0.0
    %275 = vmatpush1.msra.mxu0 0.0
    %276 = vmatprep.subr.mxu0 0.0
    %277 = vmatpush1.msra.mxu0 0.0
    %278 = vmatprep.subr.mxu0 0.0
    %279 = vmatpush1.msra.mxu0 0.0
    %280 = vmatprep.subr.mxu0 0.0
    %281 = vmatpush1.msra.mxu0 0.0
    %282 = vmatprep.subr.mxu0 0.0
    %283 = vmatpush1.msra.mxu0 0.0
    %284 = vmatprep.subr.mxu0 0.0
    %285 = vmatpush1.msra.mxu0 %v248
    %286 = vmatprep.subr.mxu0 0.0
    %287 = vmatpush1.msra.mxu0 %v247
    %288 = vmatprep.subr.mxu0 0.0
    %289 = vmatpush1.msra.mxu0 %v246
    %290 = vmatprep.subr.mxu0 0.0
    %291 = vmatpush1.msra.mxu0 %v245
    %292 = vmatprep.subr.mxu0 0.0
    %293 = vmatpush2.msra.mxu0 0.0
    %294 = vmatprep.subr.mxu0 0.0
    %295 = vmatpush2.msra.mxu0 0.0
    %296 = vmatprep.subr.mxu0 0.0
    %297 = vmatpush2.msra.mxu0 0.0
    %298 = vmatprep.subr.mxu0 0.0
    %299 = vmatpush2.msra.mxu0 0.0
    %300 = vmatprep.subr.mxu0 0.0
    %301 = vmatpush2.msra.mxu0 0.0
    %302 = vmatprep.subr.mxu0 0.0
    %303 = vmatpush2.msra.mxu0 0.0
    %304 = vmatprep.subr.mxu0 0.0
    %305 = vmatpush2.msra.mxu0 0.0
    %306 = vmatprep.subr.mxu0 0.0
    %307 = vmatpush2.msra.mxu0 0.0
    %308 = vmatprep.subr.mxu0 0.0
    %309 = vmatpush2.msra.mxu0 0.0
    %310 = vmatprep.subr.mxu0 0.0
    %311 = vmatpush2.msra.mxu0 0.0
    %312 = vmatprep.subr.mxu0 0.0
    %313 = vmatpush2.msra.mxu0 0.0
    %314 = vmatprep.subr.mxu0 0.0
    %315 = vmatpush2.msra.mxu0 0.0
    %316 = vmatprep.subr.mxu0 0.0
    %317 = vmatpush2.msra.mxu0 0.0
    %318 = vmatprep.subr.mxu0 0.0
    %319 = vmatpush2.msra.mxu0 0.0
    %320 = vmatprep.subr.mxu0 0.0
    %321 = vmatpush2.msra.mxu0 0.0
    %322 = vmatprep.subr.mxu0 0.0
    %323 = vmatpush2.msra.mxu0 0.0
    %324 = vmatprep.mubr.f32.mxu0 0.0
    %325 = vmatmul.mubr.f32.gmra.mxu0 %v258
    %v326 = vpop.f32.mrf.mxu0
    %v327 = vadd.f32 %v255, %v326
    %v328 = vpop.f32.mrf.mxu0
    %329 = vdwg.mxu0
    %v330 = vmax.f32 %v327, 0.0
    %v331 = vld [vmem:[%s5] sm:$0x1]
    %v333 = vlaneseq
    %v334 = vshrl.u32 %v333, 7
    %v335 = vsub.s32 0, %v334
    %v336 = vrot.slane %v331, %v335
    %v338 = vmul.f32 %v330, %v336
    %v339 = vsel %vm169, %v338, 0.0
    %340 = vadd.xlane.f32.xlu0 %v339
    %v341 = vpop.xlane.xlu0 %340
    %v342 = vld [vmem:[#allocation2] sm:$0x1]
    %v344 = vlaneseq
    %v345 = vshrl.u32 %v344, 7
    %v346 = vsub.s32 0, %v345
    %v347 = vrot.slane %v342, %v346
    %v349 = vadd.f32 %v341, %v347
    %v350 = vxor.u32 %v349, 2147483648
    %v351 = vmul.f32 %v350, 1.442695
    %v352 = vpow.pop %v351
    %v353 = vadd.f32 %v352, 1.0
    %v354 = vrcp.pop %v353
    %v355 = vmul.f32 1.0, %v354
    %356 = vxpose.xlu0.b32.start [1/16] %v355, 128
    %357 = vxpose.xlu0.b32.cont [2/16] 0.0, 128
    %358 = vxpose.xlu0.b32.cont [3/16] 0.0, 128
    %359 = vxpose.xlu0.b32.cont [4/16] 0.0, 128
    %360 = vxpose.xlu0.b32.cont [5/16] 0.0, 128
    %361 = vxpose.xlu0.b32.cont [6/16] 0.0, 128
    %362 = vxpose.xlu0.b32.cont [7/16] 0.0, 128
    %363 = vxpose.xlu0.b32.cont [8/16] 0.0, 128
    %364 = vxpose.xlu0.b32.cont [9/16] 0.0, 128
    %365 = vxpose.xlu0.b32.cont [10/16] 0.0, 128
    %366 = vxpose.xlu0.b32.cont [11/16] 0.0, 128
    %367 = vxpose.xlu0.b32.cont [12/16] 0.0, 128
    %368 = vxpose.xlu0.b32.cont [13/16] 0.0, 128
    %369 = vxpose.xlu0.b32.cont [14/16] 0.0, 128
    %370 = vxpose.xlu0.b32.cont [15/16] 0.0, 128
    %371 = vxpose.xlu0.b32.end [16/16] 0.0, 128
    %v372 = vpop.trf.xlu0
    %v373 = vpop.trf.xlu0
    %v374 = vpop.trf.xlu0
    %v375 = vpop.trf.xlu0
    %v376 = vpop.trf.xlu0
    %v377 = vpop.trf.xlu0
    %v378 = vpop.trf.xlu0
    %v379 = vpop.trf.xlu0
    %v380 = vpop.trf.xlu0
    %v381 = vpop.trf.xlu0
    %v382 = vpop.trf.xlu0
    %v383 = vpop.trf.xlu0
    %v384 = vpop.trf.xlu0
    %v385 = vpop.trf.xlu0
    %v386 = vpop.trf.xlu0
    %v387 = vpop.trf.xlu0
    %vm388 = vcmask 57344
    %389 = vst.msk [vmem:[#allocation9] sm:$0x1] %vm388, %v372
    // Predicated region
    $region42: #{tpu_custom_call.1} parent=1 // pred_check
      _
    $region43: #{tpu_custom_call.1} parent=1 // pred_check_branch
      %391 = sbr.rel (0) target = $region45
    $region44: #{tpu_custom_call.1} parent=1 // pred_region
      %s393 = ssub.s32 16, 16
      %394 = vsyncadd [#allocation5], %s393
      %s396 = sshll.u32 [#allocation9], 4
      %s397 = int_to_ptr.vmem [resolvable:$true] %s396
      %399 = dma.vmem_to_hbm [thread:$0]  %s397, 16, %s7, [#allocation5]
    $region45: #{tpu_custom_call.1} parent=1 // pred_fallthru
      _
    // Predicated region
    $region46: #{tpu_custom_call.1} parent=1 // pred_check
      _
    $region47: #{tpu_custom_call.1} parent=1 // pred_check_branch
      %401 = sbr.rel (0) target = $region49
    $region48: #{tpu_custom_call.1} parent=1 // pred_region
      %402 = dma.done [#allocation5], 16
    $region49: #{tpu_custom_call.1} parent=1 // pred_fallthru
      _
    %403 = vsyncpa [#allocation4], 1
    %404 = vsyncpa [#allocation7], 1
    %405 = vsyncpa [#allocation5], 1

</llo_original>
